<compile_context>
chip_gen: v7x
topology: tpu7x:2x2x1
jax: 0.10.0
libtpu: 0.0.40
codegen_flags: <defaults>
</compile_context>

<pallas_src>
import jax
import jax.numpy as jnp
from jax.experimental import pallas as pl
from jax.experimental.pallas import tpu as pltpu

_LANE = 128
_SUBLANE = 8


def _round_up(n, m):
    return ((n + m - 1) // m) * m


def _mlp3_kernel(x_ref, w1_ref, b1_ref, w2_ref, b2_ref, w3_ref, b3_ref, o_ref):
    # x_ref : (TB, IN)        w1_ref: (IN,  H1p)  b1_ref: (1, H1p)
    # w2_ref: (H1p, H2p)      b2_ref: (1, H2p)
    # w3_ref: (H2p, NOUT)     b3_ref: (1, NOUT)
    # o_ref : (TB, NOUT)      hidden dims padded to 128-lane multiples; padded
    #                         columns/rows of the packed weights are zero so
    #                         the sigmoid(0)=0.5 in padded lanes never leaks.
    x = x_ref[...]

    h1 = jnp.dot(x, w1_ref[...], preferred_element_type=jnp.float32) + b1_ref[...]
    h1 = jax.nn.sigmoid(h1).astype(x.dtype)

    h2 = jnp.dot(h1, w2_ref[...], preferred_element_type=jnp.float32) + b2_ref[...]
    h2 = jax.nn.sigmoid(h2).astype(x.dtype)

    out = jnp.dot(h2, w3_ref[...], preferred_element_type=jnp.float32) + b3_ref[...]
    o_ref[...] = out.astype(o_ref.dtype)


def pack_params(params, *, weight_dtype=jnp.float32):
    """One-time weight packing: (out, in) -> (in, out), pad hidden dims to 128.

    Zero-padded columns of W1ᵀ/W2ᵀ and zero-padded *rows* of W2ᵀ/W3ᵀ guarantee
    the padded hidden lanes (sigmoid(0)=0.5) contribute nothing downstream.
    Call once and reuse across forward calls (latency-sensitive inference).
    """
    w1, b1, w2, b2, w3, b3 = params
    in_features = w1.shape[1]
    h1, h2, n_out = w1.shape[0], w2.shape[0], w3.shape[0]
    assert in_features % _LANE == 0, "in_features must be a multiple of 128"

    h1p = _round_up(h1, _LANE)
    h2p = _round_up(h2, _LANE)

    w1t = jnp.pad(w1.T.astype(jnp.float32),
                  ((0, 0), (0, h1p - h1))).astype(weight_dtype)
    w2t = jnp.pad(w2.T.astype(jnp.float32),
                  ((0, h1p - h1), (0, h2p - h2))).astype(weight_dtype)
    w3t = jnp.pad(w3.T.astype(jnp.float32),
                  ((0, h2p - h2), (0, 0))).astype(weight_dtype)
    b1r = jnp.pad(b1.astype(jnp.float32), (0, h1p - h1)).reshape(1, h1p)
    b2r = jnp.pad(b2.astype(jnp.float32), (0, h2p - h2)).reshape(1, h2p)
    b3r = b3.astype(jnp.float32).reshape(1, n_out)
    return (w1t, b1r, w2t, b2r, w3t, b3r)


def my_ann_l3_sigmoid_forward(x_nchw, packed, *, max_tile_b=1024):
    """x_nchw: (B, 1, 32, 32); packed = pack_params(params). Returns (B, 10) f32."""
    w1t, b1r, w2t, b2r, w3t, b3r = packed
    B = x_nchw.shape[0]

    # torch.flatten(x, 1) — metadata-only reshape, x is NOT copied or padded.
    x2d = x_nchw.reshape(B, -1)
    in_features = x2d.shape[1]
    assert in_features == w1t.shape[0]
    h1p, h2p, n_out = w1t.shape[1], w2t.shape[1], w3t.shape[1]

    # Batch tile: big enough to amortize the ~0.35 us per-step overhead, small
    # enough for VMEM, and >= 2 grid steps for medium/large B so the parallel
    # batch axis can use both TensorCores on v7x.
    if B >= 16:
        tile_b = min(max_tile_b, _round_up(pl.cdiv(B, 2), _SUBLANE))
    else:
        tile_b = _round_up(B, _SUBLANE)
    grid = (pl.cdiv(B, tile_b),)

    elt_x = x2d.dtype.itemsize
    w_bytes = sum(int(a.size) * a.dtype.itemsize
                  for a in (w1t, b1r, w2t, b2r, w3t, b3r))
    x_tile_bytes = tile_b * in_features * elt_x
    out_tile_bytes = tile_b * n_out * 4
    # double-buffered x/out tiles + resident (double-buffered) weights + slack
    # for f32 intermediates.
    vmem_limit = min(2 * x_tile_bytes + 2 * w_bytes + 2 * out_tile_bytes
                     + (8 << 20), 48 << 20)

    cost = pl.CostEstimate(
        flops=2 * B * (in_features * h1p + h1p * h2p + h2p * n_out),
        transcendentals=B * (h1p + h2p),
        bytes_accessed=B * in_features * elt_x + w_bytes + B * n_out * 4,
    )

    out = pl.pallas_call(
        _mlp3_kernel,
        out_shape=jax.ShapeDtypeStruct((B, n_out), jnp.float32),
        grid_spec=pltpu.PrefetchScalarGridSpec(
            num_scalar_prefetch=0,
            grid=grid,
            in_specs=[
                pl.BlockSpec((tile_b, in_features), lambda i: (i, 0)),  # x (streams)
                pl.BlockSpec((in_features, h1p), lambda i: (0, 0)),     # W1^T
                pl.BlockSpec((1, h1p), lambda i: (0, 0)),               # b1
                pl.BlockSpec((h1p, h2p), lambda i: (0, 0)),             # W2^T
                pl.BlockSpec((1, h2p), lambda i: (0, 0)),               # b2
                pl.BlockSpec((h2p, n_out), lambda i: (0, 0)),           # W3^T
                pl.BlockSpec((1, n_out), lambda i: (0, 0)),             # b3
            ],
            out_specs=pl.BlockSpec((tile_b, n_out), lambda i: (i, 0)),  # (B, 10)
        ),
        compiler_params=pltpu.CompilerParams(
            dimension_semantics=("parallel",),      # batch axis shards across TCs
            vmem_limit_bytes=int(vmem_limit),
        ),
        cost_estimate=cost,
    )(x2d, w1t, b1r, w2t, b2r, w3t, b3r)

    return out


def init_params(key, num_layer1, num_layer2):
    """Deterministic synthetic params with PyTorch nn.Linear shapes: W (out, in), b (out,)."""
    in_features = 32 * 32
    ks = jax.random.split(key, 6)

    def lin(kw, kb, fan_in, fan_out):
        bound = 1.0 / jnp.sqrt(fan_in)
        w = jax.random.uniform(kw, (fan_out, fan_in), jnp.float32, -bound, bound)
        b = jax.random.uniform(kb, (fan_out,), jnp.float32, -bound, bound)
        return w, b

    w1, b1 = lin(ks[0], ks[1], in_features, num_layer1)
    w2, b2 = lin(ks[2], ks[3], num_layer1, num_layer2)
    w3, b3 = lin(ks[4], ks[5], num_layer2, 10)
    return (w1, b1, w2, b2, w3, b3)


def _reference_forward(x_nchw, params):
    w1, b1, w2, b2, w3, b3 = params
    x = x_nchw.reshape(x_nchw.shape[0], -1)
    h1 = jax.nn.sigmoid(x @ w1.T + b1)
    h2 = jax.nn.sigmoid(h1 @ w2.T + b2)
    return h2 @ w3.T + b3


if __name__ == "__main__":
    key = jax.random.PRNGKey(0)
    k_x, k_p = jax.random.split(key)

    B, num_layer1, num_layer2 = 8, 64, 32
    x = jax.random.normal(k_x, (B, 1, 32, 32), jnp.float32)  # NCHW, like the torch module
    params = init_params(k_p, num_layer1, num_layer2)

    packed = pack_params(params)                       # one-time weight packing
    out = my_ann_l3_sigmoid_forward(x, packed)
    out = jax.block_until_ready(out)

    ref = _reference_forward(x, params)
    assert out.shape == (B, 10)
    assert jnp.allclose(out, ref, atol=1e-4, rtol=1e-4), "mismatch vs reference"

    print("KERNEL_OK")
</pallas_src>

<mosaic_0001>
module attributes {stable_mosaic.version = 11 : i64} {
  func.func @_mlp3_kernel(%arg0: i32, %arg1: memref<8x1024xf32, #tpu.memory_space<vmem>>, %arg2: memref<1024x128xf32, #tpu.memory_space<vmem>>, %arg3: memref<1x128xf32, #tpu.memory_space<vmem>>, %arg4: memref<128x128xf32, #tpu.memory_space<vmem>>, %arg5: memref<1x128xf32, #tpu.memory_space<vmem>>, %arg6: memref<128x10xf32, #tpu.memory_space<vmem>>, %arg7: memref<1x10xf32, #tpu.memory_space<vmem>>, %arg8: memref<8x10xf32, #tpu.memory_space<vmem>>) attributes {dimension_semantics = [#tpu.dimension_semantics<parallel>], iteration_bounds = array<i64: 1>, scalar_prefetch = 0 : i64, scratch_operands = 0 : i64, tpu.core_type = #tpu.core_type<tc>, window_params = [{transform_indices = @transform_0, window_bounds = array<i64: 8, 1024>}, {pipeline_mode = #tpu.pipeline_mode<synchronous>, transform_indices = @transform_1, window_bounds = array<i64: 1024, 128>}, {pipeline_mode = #tpu.pipeline_mode<synchronous>, transform_indices = @transform_2, window_bounds = array<i64: 1, 128>}, {pipeline_mode = #tpu.pipeline_mode<synchronous>, transform_indices = @transform_3, window_bounds = array<i64: 128, 128>}, {pipeline_mode = #tpu.pipeline_mode<synchronous>, transform_indices = @transform_4, window_bounds = array<i64: 1, 128>}, {pipeline_mode = #tpu.pipeline_mode<synchronous>, transform_indices = @transform_5, window_bounds = array<i64: 128, 10>}, {pipeline_mode = #tpu.pipeline_mode<synchronous>, transform_indices = @transform_6, window_bounds = array<i64: 1, 10>}, {transform_indices = @transform_7, window_bounds = array<i64: 8, 10>}]} {
    %c0 = arith.constant 0 : index
    %c0_0 = arith.constant 0 : index
    %0 = vector.load %arg1[%c0, %c0_0] : memref<8x1024xf32, #tpu.memory_space<vmem>>, vector<8x1024xf32>
    %c0_1 = arith.constant 0 : index
    %c0_2 = arith.constant 0 : index
    %1 = vector.load %arg2[%c0_1, %c0_2] : memref<1024x128xf32, #tpu.memory_space<vmem>>, vector<1024x128xf32>
    %cst = arith.constant dense<0.000000e+00> : vector<8x128xf32>
    %2 = tpu.matmul %0, %1, %cst {dimension_numbers = #tpu.dot_dimension_numbers<[1], [0], [0], [1], [0, 0, 1, 1], [], []>} : vector<8x1024xf32>, vector<1024x128xf32>, vector<8x128xf32> -> vector<8x128xf32>
    %c0_3 = arith.constant 0 : index
    %c0_4 = arith.constant 0 : index
    %3 = vector.load %arg3[%c0_3, %c0_4] : memref<1x128xf32, #tpu.memory_space<vmem>>, vector<1x128xf32>
    %4 = vector.broadcast %3 : vector<1x128xf32> to vector<8x128xf32>
    %5 = arith.addf %2, %4 : vector<8x128xf32>
    %6 = arith.negf %5 : vector<8x128xf32>
    %7 = math.exp %6 : vector<8x128xf32>
    %cst_5 = arith.constant 1.000000e+00 : f32
    %8 = vector.broadcast %cst_5 : f32 to vector<8x128xf32>
    %9 = arith.addf %8, %7 : vector<8x128xf32>
    %10 = arith.divf %8, %9 : vector<8x128xf32>
    %c0_6 = arith.constant 0 : index
    %c0_7 = arith.constant 0 : index
    %11 = vector.load %arg4[%c0_6, %c0_7] : memref<128x128xf32, #tpu.memory_space<vmem>>, vector<128x128xf32>
    %cst_8 = arith.constant dense<0.000000e+00> : vector<8x128xf32>
    %12 = tpu.matmul %10, %11, %cst_8 {dimension_numbers = #tpu.dot_dimension_numbers<[1], [0], [0], [1], [0, 0, 1, 1], [], []>} : vector<8x128xf32>, vector<128x128xf32>, vector<8x128xf32> -> vector<8x128xf32>
    %c0_9 = arith.constant 0 : index
    %c0_10 = arith.constant 0 : index
    %13 = vector.load %arg5[%c0_9, %c0_10] : memref<1x128xf32, #tpu.memory_space<vmem>>, vector<1x128xf32>
    %14 = vector.broadcast %13 : vector<1x128xf32> to vector<8x128xf32>
    %15 = arith.addf %12, %14 : vector<8x128xf32>
    %16 = arith.negf %15 : vector<8x128xf32>
    %17 = math.exp %16 : vector<8x128xf32>
    %cst_11 = arith.constant 1.000000e+00 : f32
    %18 = vector.broadcast %cst_11 : f32 to vector<8x128xf32>
    %19 = arith.addf %18, %17 : vector<8x128xf32>
    %20 = arith.divf %18, %19 : vector<8x128xf32>
    %c0_12 = arith.constant 0 : index
    %c0_13 = arith.constant 0 : index
    %21 = vector.load %arg6[%c0_12, %c0_13] : memref<128x10xf32, #tpu.memory_space<vmem>>, vector<128x10xf32>
    %cst_14 = arith.constant dense<0.000000e+00> : vector<8x10xf32>
    %22 = tpu.matmul %20, %21, %cst_14 {dimension_numbers = #tpu.dot_dimension_numbers<[1], [0], [0], [1], [0, 0, 1, 1], [], []>} : vector<8x128xf32>, vector<128x10xf32>, vector<8x10xf32> -> vector<8x10xf32>
    %c0_15 = arith.constant 0 : index
    %c0_16 = arith.constant 0 : index
    %23 = vector.load %arg7[%c0_15, %c0_16] : memref<1x10xf32, #tpu.memory_space<vmem>>, vector<1x10xf32>
    %24 = vector.broadcast %23 : vector<1x10xf32> to vector<8x10xf32>
    %25 = arith.addf %22, %24 : vector<8x10xf32>
    %c0_17 = arith.constant 0 : index
    %c0_18 = arith.constant 0 : index
    %26 = vector.load %arg8[%c0_17, %c0_18] : memref<8x10xf32, #tpu.memory_space<vmem>>, vector<8x10xf32>
    tpu.vector_store %arg8[%c0_17, %c0_18], %25 {strides = array<i32>} : memref<8x10xf32, #tpu.memory_space<vmem>>, vector<8x10xf32>,
    return
  }
  func.func @transform_0(%arg0: i32) -> (i32, i32) {
    %c0_i32 = arith.constant 0 : i32
    %c0_i32_0 = arith.constant 0 : i32
    return %arg0, %c0_i32 : i32, i32
  }
  func.func @transform_1(%arg0: i32) -> (i32, i32) {
    %c0_i32 = arith.constant 0 : i32
    %c0_i32_0 = arith.constant 0 : i32
    %c0_i32_1 = arith.constant 0 : i32
    return %c0_i32, %c0_i32_0 : i32, i32
  }
  func.func @transform_2(%arg0: i32) -> (i32, i32) {
    %c0_i32 = arith.constant 0 : i32
    %c0_i32_0 = arith.constant 0 : i32
    %c0_i32_1 = arith.constant 0 : i32
    return %c0_i32, %c0_i32_0 : i32, i32
  }
  func.func @transform_3(%arg0: i32) -> (i32, i32) {
    %c0_i32 = arith.constant 0 : i32
    %c0_i32_0 = arith.constant 0 : i32
    %c0_i32_1 = arith.constant 0 : i32
    return %c0_i32, %c0_i32_0 : i32, i32
  }
  func.func @transform_4(%arg0: i32) -> (i32, i32) {
    %c0_i32 = arith.constant 0 : i32
    %c0_i32_0 = arith.constant 0 : i32
    %c0_i32_1 = arith.constant 0 : i32
    return %c0_i32, %c0_i32_0 : i32, i32
  }
  func.func @transform_5(%arg0: i32) -> (i32, i32) {
    %c0_i32 = arith.constant 0 : i32
    %c0_i32_0 = arith.constant 0 : i32
    %c0_i32_1 = arith.constant 0 : i32
    return %c0_i32, %c0_i32_0 : i32, i32
  }
  func.func @transform_6(%arg0: i32) -> (i32, i32) {
    %c0_i32 = arith.constant 0 : i32
    %c0_i32_0 = arith.constant 0 : i32
    %c0_i32_1 = arith.constant 0 : i32
    return %c0_i32, %c0_i32_0 : i32, i32
  }
  func.func @transform_7(%arg0: i32) -> (i32, i32) {
    %c0_i32 = arith.constant 0 : i32
    %c0_i32_0 = arith.constant 0 : i32
    return %arg0, %c0_i32 : i32, i32
  }
}

</mosaic_0001>

<llo_original>
// kernel: tpu_custom_call.1
$region0: #{tpu_custom_call.1}
  #allocation0 [shape = 'u32[]', space=smem, size = 0x4, offset = 0x4, fixed_abs, tag = 'smem constant byte address 0x4 - core index']
  #allocation1 [shape = 'u32[144,128]{1,0:T(1,128)}', space=vmem, size = 0x12000, scoped, tag = 'internal scratch']
  %s0 = inlined_call_operand.hbm [shape: f32[8,1024], index: 0, kind: input, shape index: {}]
  %s1 = inlined_call_operand.hbm [shape: f32[1024,128], index: 1, kind: input, shape index: {}]
  %s2 = inlined_call_operand.vmem [shape: f32[1,128], index: 2, kind: input, shape index: {}]
  %s3 = inlined_call_operand.vmem [shape: f32[128,128], index: 3, kind: input, shape index: {}]
  %s4 = inlined_call_operand.vmem [shape: f32[1,128], index: 4, kind: input, shape index: {}]
  %s5 = inlined_call_operand.vmem [shape: f32[128,10], index: 5, kind: input, shape index: {}]
  %s6 = inlined_call_operand.vmem [shape: f32[1,10], index: 6, kind: input, shape index: {}]
  %s7 = inlined_call_operand.hbm [shape: f32[8,10], index: 7, kind: output, shape index: {}]
  %s8 = sld [smem:[#allocation0]]
  $region46: #{tpu_custom_call.1} parent=0
    _
  %s10 = ssub.s32 1, %s8
  %s11 = scalar_select 0, %s10, %s8
  $region1: #{tpu_custom_call.1} parent=0
    #allocation2 [shape = 'u8[32768]{0}', space=vmem, size = 0x8000, scoped, tag = 'input window, operand 0, single buffered']
    #allocation3 [shape = 's32[1]{0}', space=sflag, size = 0x4, scoped, tag = 'scoped memory for tpu_custom_call.1']
    #allocation4 [shape = 's32[1]{0}', space=sflag, size = 0x4, scoped, tag = 'scoped memory for tpu_custom_call.1']
    #allocation5 [shape = 'u8[524288]{0}', space=vmem, size = 0x80000, scoped, tag = 'input window, operand 1, single buffered']
    #allocation6 [shape = 's32[1]{0}', space=sflag, size = 0x4, scoped, tag = 'scoped memory for tpu_custom_call.1']
    #allocation7 [shape = 'u8[4096]{0}', space=vmem, size = 0x1000, scoped, tag = 'output window, operand 0, single buffered']
    %12 = vsyncpa [#allocation3], 0
    %13 = vsyncpa [#allocation6], 0
    %14 = vsyncpa [#allocation4], 0
    // Predicated region
    $region2: #{tpu_custom_call.1} parent=1 // pred_check
      _
    $region3: #{tpu_custom_call.1} parent=1 // pred_check_branch
      %16 = sbr.rel (0) target = $region5
    $region4: #{tpu_custom_call.1} parent=1 // pred_region
      %s18 = ssub.s32 1024, 1024
      %19 = vsyncadd [#allocation3], %s18
      %s21 = sshll.u32 [#allocation2], 4
      %s22 = int_to_ptr.vmem [resolvable:$true] %s21
      %24 = dma.hbm_to_vmem [thread:$0]  %s0, 1024, %s22, [#allocation3]
    $region5: #{tpu_custom_call.1} parent=1 // pred_fallthru
      _
    // Predicated region
    $region6: #{tpu_custom_call.1} parent=1 // pred_check
      _
    $region7: #{tpu_custom_call.1} parent=1 // pred_check_branch
      %26 = sbr.rel (0) target = $region9
    $region8: #{tpu_custom_call.1} parent=1 // pred_region
      %s28 = ssub.s32 16384, 16384
      %29 = vsyncadd [#allocation6], %s28
      %s30 = sshll.u32 [#allocation5], 4
      %s31 = int_to_ptr.vmem [resolvable:$true] %s30
      %36 = dma.hbm_to_vmem [thread:$0]  %s1, 16384, %s31, [#allocation6], 128, 128, 8
    $region9: #{tpu_custom_call.1} parent=1 // pred_fallthru
      _
    // Predicated region
    $region10: #{tpu_custom_call.1} parent=1 // pred_check
      _
    $region11: #{tpu_custom_call.1} parent=1 // pred_check_branch
      %38 = sbr.rel (0) target = $region13
    $region12: #{tpu_custom_call.1} parent=1 // pred_region
      _
    $region13: #{tpu_custom_call.1} parent=1 // pred_fallthru
      _
    // Predicated region
    $region14: #{tpu_custom_call.1} parent=1 // pred_check
      _
    $region15: #{tpu_custom_call.1} parent=1 // pred_check_branch
      %40 = sbr.rel (0) target = $region17
    $region16: #{tpu_custom_call.1} parent=1 // pred_region
      _
    $region17: #{tpu_custom_call.1} parent=1 // pred_fallthru
      _
    // Predicated region
    $region18: #{tpu_custom_call.1} parent=1 // pred_check
      _
    $region19: #{tpu_custom_call.1} parent=1 // pred_check_branch
      %42 = sbr.rel (0) target = $region21
    $region20: #{tpu_custom_call.1} parent=1 // pred_region
      _
    $region21: #{tpu_custom_call.1} parent=1 // pred_fallthru
      _
    // Predicated region
    $region22: #{tpu_custom_call.1} parent=1 // pred_check
      _
    $region23: #{tpu_custom_call.1} parent=1 // pred_check_branch
      %44 = sbr.rel (0) target = $region25
    $region24: #{tpu_custom_call.1} parent=1 // pred_region
      _
    $region25: #{tpu_custom_call.1} parent=1 // pred_fallthru
      _
    // Predicated region
    $region26: #{tpu_custom_call.1} parent=1 // pred_check
      _
    $region27: #{tpu_custom_call.1} parent=1 // pred_check_branch
      %46 = sbr.rel (0) target = $region29
    $region28: #{tpu_custom_call.1} parent=1 // pred_region
      _
    $region29: #{tpu_custom_call.1} parent=1 // pred_fallthru
      _
    // Predicated region
    $region30: #{tpu_custom_call.1} parent=1 // pred_check
      _
    $region31: #{tpu_custom_call.1} parent=1 // pred_check_branch
      %48 = sbr.rel (0) target = $region33
    $region32: #{tpu_custom_call.1} parent=1 // pred_region
      %49 = dma.done [#allocation3], 1024
    $region33: #{tpu_custom_call.1} parent=1 // pred_fallthru
      _
    // Predicated region
    $region34: #{tpu_custom_call.1} parent=1 // pred_check
      _
    $region35: #{tpu_custom_call.1} parent=1 // pred_check_branch
      %51 = sbr.rel (0) target = $region37
    $region36: #{tpu_custom_call.1} parent=1 // pred_region
      %52 = dma.done [#allocation6], 16384
    $region37: #{tpu_custom_call.1} parent=1 // pred_fallthru
      _
    %v53 = vld [vmem:[#allocation2] sm:$0xff]
    %v54 = vld [vmem:[#allocation2 + $0x8] sm:$0xff]
    %v55 = vld [vmem:[#allocation2 + $0x10] sm:$0xff]
    %v56 = vld [vmem:[#allocation2 + $0x18] sm:$0xff]
    %v57 = vld [vmem:[#allocation2 + $0x20] sm:$0xff]
    %v58 = vld [vmem:[#allocation2 + $0x28] sm:$0xff]
    %v59 = vld [vmem:[#allocation2 + $0x30] sm:$0xff]
    %v60 = vld [vmem:[#allocation2 + $0x38] sm:$0xff]
    %v61 = vld [vmem:[#allocation5] sm:$0xff]
    %v62 = vld [vmem:[#allocation5 + $0x8] sm:$0xff]
    %v63 = vld [vmem:[#allocation5 + $0x10] sm:$0xff]
    %v64 = vld [vmem:[#allocation5 + $0x18] sm:$0xff]
    %v65 = vld [vmem:[#allocation5 + $0x20] sm:$0xff]
    %v66 = vld [vmem:[#allocation5 + $0x28] sm:$0xff]
    %v67 = vld [vmem:[#allocation5 + $0x30] sm:$0xff]
    %v68 = vld [vmem:[#allocation5 + $0x38] sm:$0xff]
    %v69 = vld [vmem:[#allocation5 + $0x40] sm:$0xff]
    %v70 = vld [vmem:[#allocation5 + $0x48] sm:$0xff]
    %v71 = vld [vmem:[#allocation5 + $0x50] sm:$0xff]
    %v72 = vld [vmem:[#allocation5 + $0x58] sm:$0xff]
    %v73 = vld [vmem:[#allocation5 + $0x60] sm:$0xff]
    %v74 = vld [vmem:[#allocation5 + $0x68] sm:$0xff]
    %v75 = vld [vmem:[#allocation5 + $0x70] sm:$0xff]
    %v76 = vld [vmem:[#allocation5 + $0x78] sm:$0xff]
    %v77 = vld [vmem:[#allocation5 + $0x80] sm:$0xff]
    %v78 = vld [vmem:[#allocation5 + $0x88] sm:$0xff]
    %v79 = vld [vmem:[#allocation5 + $0x90] sm:$0xff]
    %v80 = vld [vmem:[#allocation5 + $0x98] sm:$0xff]
    %v81 = vld [vmem:[#allocation5 + $0xa0] sm:$0xff]
    %v82 = vld [vmem:[#allocation5 + $0xa8] sm:$0xff]
    %v83 = vld [vmem:[#allocation5 + $0xb0] sm:$0xff]
    %v84 = vld [vmem:[#allocation5 + $0xb8] sm:$0xff]
    %v85 = vld [vmem:[#allocation5 + $0xc0] sm:$0xff]
    %v86 = vld [vmem:[#allocation5 + $0xc8] sm:$0xff]
    %v87 = vld [vmem:[#allocation5 + $0xd0] sm:$0xff]
    %v88 = vld [vmem:[#allocation5 + $0xd8] sm:$0xff]
    %v89 = vld [vmem:[#allocation5 + $0xe0] sm:$0xff]
    %v90 = vld [vmem:[#allocation5 + $0xe8] sm:$0xff]
    %v91 = vld [vmem:[#allocation5 + $0xf0] sm:$0xff]
    %v92 = vld [vmem:[#allocation5 + $0xf8] sm:$0xff]
    %v93 = vld [vmem:[#allocation5 + $0x100] sm:$0xff]
    %v94 = vld [vmem:[#allocation5 + $0x108] sm:$0xff]
    %v95 = vld [vmem:[#allocation5 + $0x110] sm:$0xff]
    %v96 = vld [vmem:[#allocation5 + $0x118] sm:$0xff]
    %v97 = vld [vmem:[#allocation5 + $0x120] sm:$0xff]
    %v98 = vld [vmem:[#allocation5 + $0x128] sm:$0xff]
    %v99 = vld [vmem:[#allocation5 + $0x130] sm:$0xff]
    %v100 = vld [vmem:[#allocation5 + $0x138] sm:$0xff]
    %v101 = vld [vmem:[#allocation5 + $0x140] sm:$0xff]
    %v102 = vld [vmem:[#allocation5 + $0x148] sm:$0xff]
    %v103 = vld [vmem:[#allocation5 + $0x150] sm:$0xff]
    %v104 = vld [vmem:[#allocation5 + $0x158] sm:$0xff]
    %v105 = vld [vmem:[#allocation5 + $0x160] sm:$0xff]
    %v106 = vld [vmem:[#allocation5 + $0x168] sm:$0xff]
    %v107 = vld [vmem:[#allocation5 + $0x170] sm:$0xff]
    %v108 = vld [vmem:[#allocation5 + $0x178] sm:$0xff]
    %v109 = vld [vmem:[#allocation5 + $0x180] sm:$0xff]
    %v110 = vld [vmem:[#allocation5 + $0x188] sm:$0xff]
    %v111 = vld [vmem:[#allocation5 + $0x190] sm:$0xff]
    %v112 = vld [vmem:[#allocation5 + $0x198] sm:$0xff]
    %v113 = vld [vmem:[#allocation5 + $0x1a0] sm:$0xff]
    %v114 = vld [vmem:[#allocation5 + $0x1a8] sm:$0xff]
    %v115 = vld [vmem:[#allocation5 + $0x1b0] sm:$0xff]
    %v116 = vld [vmem:[#allocation5 + $0x1b8] sm:$0xff]
    %v117 = vld [vmem:[#allocation5 + $0x1c0] sm:$0xff]
    %v118 = vld [vmem:[#allocation5 + $0x1c8] sm:$0xff]
    %v119 = vld [vmem:[#allocation5 + $0x1d0] sm:$0xff]
    %v120 = vld [vmem:[#allocation5 + $0x1d8] sm:$0xff]
    %v121 = vld [vmem:[#allocation5 + $0x1e0] sm:$0xff]
    %v122 = vld [vmem:[#allocation5 + $0x1e8] sm:$0xff]
    %v123 = vld [vmem:[#allocation5 + $0x1f0] sm:$0xff]
    %v124 = vld [vmem:[#allocation5 + $0x1f8] sm:$0xff]
    %v125 = vld [vmem:[#allocation5 + $0x200] sm:$0xff]
    %v126 = vld [vmem:[#allocation5 + $0x208] sm:$0xff]
    %v127 = vld [vmem:[#allocation5 + $0x210] sm:$0xff]
    %v128 = vld [vmem:[#allocation5 + $0x218] sm:$0xff]
    %v129 = vld [vmem:[#allocation5 + $0x220] sm:$0xff]
    %v130 = vld [vmem:[#allocation5 + $0x228] sm:$0xff]
    %v131 = vld [vmem:[#allocation5 + $0x230] sm:$0xff]
    %v132 = vld [vmem:[#allocation5 + $0x238] sm:$0xff]
    %v133 = vld [vmem:[#allocation5 + $0x240] sm:$0xff]
    %v134 = vld [vmem:[#allocation5 + $0x248] sm:$0xff]
    %v135 = vld [vmem:[#allocation5 + $0x250] sm:$0xff]
    %v136 = vld [vmem:[#allocation5 + $0x258] sm:$0xff]
    %v137 = vld [vmem:[#allocation5 + $0x260] sm:$0xff]
    %v138 = vld [vmem:[#allocation5 + $0x268] sm:$0xff]
    %v139 = vld [vmem:[#allocation5 + $0x270] sm:$0xff]
    %v140 = vld [vmem:[#allocation5 + $0x278] sm:$0xff]
    %v141 = vld [vmem:[#allocation5 + $0x280] sm:$0xff]
    %v142 = vld [vmem:[#allocation5 + $0x288] sm:$0xff]
    %v143 = vld [vmem:[#allocation5 + $0x290] sm:$0xff]
    %v144 = vld [vmem:[#allocation5 + $0x298] sm:$0xff]
    %v145 = vld [vmem:[#allocation5 + $0x2a0] sm:$0xff]
    %v146 = vld [vmem:[#allocation5 + $0x2a8] sm:$0xff]
    %v147 = vld [vmem:[#allocation5 + $0x2b0] sm:$0xff]
    %v148 = vld [vmem:[#allocation5 + $0x2b8] sm:$0xff]
    %v149 = vld [vmem:[#allocation5 + $0x2c0] sm:$0xff]
    %v150 = vld [vmem:[#allocation5 + $0x2c8] sm:$0xff]
    %v151 = vld [vmem:[#allocation5 + $0x2d0] sm:$0xff]
    %v152 = vld [vmem:[#allocation5 + $0x2d8] sm:$0xff]
    %v153 = vld [vmem:[#allocation5 + $0x2e0] sm:$0xff]
    %v154 = vld [vmem:[#allocation5 + $0x2e8] sm:$0xff]
    %v155 = vld [vmem:[#allocation5 + $0x2f0] sm:$0xff]
    %v156 = vld [vmem:[#allocation5 + $0x2f8] sm:$0xff]
    %v157 = vld [vmem:[#allocation5 + $0x300] sm:$0xff]
    %v158 = vld [vmem:[#allocation5 + $0x308] sm:$0xff]
    %v159 = vld [vmem:[#allocation5 + $0x310] sm:$0xff]
    %v160 = vld [vmem:[#allocation5 + $0x318] sm:$0xff]
    %v161 = vld [vmem:[#allocation5 + $0x320] sm:$0xff]
    %v162 = vld [vmem:[#allocation5 + $0x328] sm:$0xff]
    %v163 = vld [vmem:[#allocation5 + $0x330] sm:$0xff]
    %v164 = vld [vmem:[#allocation5 + $0x338] sm:$0xff]
    %v165 = vld [vmem:[#allocation5 + $0x340] sm:$0xff]
    %v166 = vld [vmem:[#allocation5 + $0x348] sm:$0xff]
    %v167 = vld [vmem:[#allocation5 + $0x350] sm:$0xff]
    %v168 = vld [vmem:[#allocation5 + $0x358] sm:$0xff]
    %v169 = vld [vmem:[#allocation5 + $0x360] sm:$0xff]
    %v170 = vld [vmem:[#allocation5 + $0x368] sm:$0xff]
    %v171 = vld [vmem:[#allocation5 + $0x370] sm:$0xff]
    %v172 = vld [vmem:[#allocation5 + $0x378] sm:$0xff]
    %v173 = vld [vmem:[#allocation5 + $0x380] sm:$0xff]
    %v174 = vld [vmem:[#allocation5 + $0x388] sm:$0xff]
    %v175 = vld [vmem:[#allocation5 + $0x390] sm:$0xff]
    %v176 = vld [vmem:[#allocation5 + $0x398] sm:$0xff]
    %v177 = vld [vmem:[#allocation5 + $0x3a0] sm:$0xff]
    %v178 = vld [vmem:[#allocation5 + $0x3a8] sm:$0xff]
    %v179 = vld [vmem:[#allocation5 + $0x3b0] sm:$0xff]
    %v180 = vld [vmem:[#allocation5 + $0x3b8] sm:$0xff]
    %v181 = vld [vmem:[#allocation5 + $0x3c0] sm:$0xff]
    %v182 = vld [vmem:[#allocation5 + $0x3c8] sm:$0xff]
    %v183 = vld [vmem:[#allocation5 + $0x3d0] sm:$0xff]
    %v184 = vld [vmem:[#allocation5 + $0x3d8] sm:$0xff]
    %v185 = vld [vmem:[#allocation5 + $0x3e0] sm:$0xff]
    %v186 = vld [vmem:[#allocation5 + $0x3e8] sm:$0xff]
    %v187 = vld [vmem:[#allocation5 + $0x3f0] sm:$0xff]
    %v188 = vld [vmem:[#allocation5 + $0x3f8] sm:$0xff]
    %v189 = vld [vmem:[%s2] sm:$0x1]
    %v191 = vlaneseq
    %v192 = vshrl.u32 %v191, 7
    %v193 = vsub.s32 0, %v192
    %v194 = vrot.slane %v189, %v193
    %196 = vmatprep.subr.mxu0 0.0
    %197 = vmatpush1.msra.mxu0 %v61
    %198 = vmatprep.subr.mxu0 0.0
    %199 = vmatpush1.msra.mxu0 %v62
    %200 = vmatprep.subr.mxu0 0.0
    %201 = vmatpush1.msra.mxu0 %v63
    %202 = vmatprep.subr.mxu0 0.0
    %203 = vmatpush1.msra.mxu0 %v64
    %204 = vmatprep.subr.mxu0 0.0
    %205 = vmatpush1.msra.mxu0 %v65
    %206 = vmatprep.subr.mxu0 0.0
    %207 = vmatpush1.msra.mxu0 %v66
    %208 = vmatprep.subr.mxu0 0.0
    %209 = vmatpush1.msra.mxu0 %v67
    %210 = vmatprep.subr.mxu0 0.0
    %211 = vmatpush1.msra.mxu0 %v68
    %212 = vmatprep.subr.mxu0 0.0
    %213 = vmatpush1.msra.mxu0 %v69
    %214 = vmatprep.subr.mxu0 0.0
    %215 = vmatpush1.msra.mxu0 %v70
    %216 = vmatprep.subr.mxu0 0.0
    %217 = vmatpush1.msra.mxu0 %v71
    %218 = vmatprep.subr.mxu0 0.0
    %219 = vmatpush1.msra.mxu0 %v72
    %220 = vmatprep.subr.mxu0 0.0
    %221 = vmatpush1.msra.mxu0 %v73
    %222 = vmatprep.subr.mxu0 0.0
    %223 = vmatpush1.msra.mxu0 %v74
    %224 = vmatprep.subr.mxu0 0.0
    %225 = vmatpush1.msra.mxu0 %v75
    %226 = vmatprep.subr.mxu0 0.0
    %227 = vmatpush1.msra.mxu0 %v76
    %228 = vmatprep.subr.mxu0 0.0
    %229 = vmatpush1.msra.mxu0 %v77
    %230 = vmatprep.subr.mxu0 0.0
    %231 = vmatpush1.msra.mxu0 %v78
    %232 = vmatprep.subr.mxu0 0.0
    %233 = vmatpush1.msra.mxu0 %v79
    %234 = vmatprep.subr.mxu0 0.0
    %235 = vmatpush1.msra.mxu0 %v80
    %236 = vmatprep.subr.mxu0 0.0
    %237 = vmatpush1.msra.mxu0 %v81
    %238 = vmatprep.subr.mxu0 0.0
    %239 = vmatpush1.msra.mxu0 %v82
    %240 = vmatprep.subr.mxu0 0.0
    %241 = vmatpush1.msra.mxu0 %v83
    %242 = vmatprep.subr.mxu0 0.0
    %243 = vmatpush1.msra.mxu0 %v84
    %244 = vmatprep.subr.mxu0 0.0
    %245 = vmatpush1.msra.mxu0 %v85
    %246 = vmatprep.subr.mxu0 0.0
    %247 = vmatpush1.msra.mxu0 %v86
    %248 = vmatprep.subr.mxu0 0.0
    %249 = vmatpush1.msra.mxu0 %v87
    %250 = vmatprep.subr.mxu0 0.0
    %251 = vmatpush1.msra.mxu0 %v88
    %252 = vmatprep.subr.mxu0 0.0
    %253 = vmatpush1.msra.mxu0 %v89
    %254 = vmatprep.subr.mxu0 0.0
    %255 = vmatpush1.msra.mxu0 %v90
    %256 = vmatprep.subr.mxu0 0.0
    %257 = vmatpush1.msra.mxu0 %v91
    %258 = vmatprep.subr.mxu0 0.0
    %259 = vmatpush1.msra.mxu0 %v92
    %260 = vmatprep.mubr.f32.mxu0 %v54
    %261 = vmatmul.mubr.f32.gmra.mrb[0].mxu0 %v53
    %v262 = vpop.f32.mrb[0].mxu0
    %v263 = vadd.f32 %v194, %v262
    %v264 = vpop.f32.mrb[0].mxu0
    %265 = vdwg.mxu0
    %266 = vmatprep.subr.mxu0 0.0
    %267 = vmatpush1.msra.mxu0 %v93
    %268 = vmatprep.subr.mxu0 0.0
    %269 = vmatpush1.msra.mxu0 %v94
    %270 = vmatprep.subr.mxu0 0.0
    %271 = vmatpush1.msra.mxu0 %v95
    %272 = vmatprep.subr.mxu0 0.0
    %273 = vmatpush1.msra.mxu0 %v96
    %274 = vmatprep.subr.mxu0 0.0
    %275 = vmatpush1.msra.mxu0 %v97
    %276 = vmatprep.subr.mxu0 0.0
    %277 = vmatpush1.msra.mxu0 %v98
    %278 = vmatprep.subr.mxu0 0.0
    %279 = vmatpush1.msra.mxu0 %v99
    %280 = vmatprep.subr.mxu0 0.0
    %281 = vmatpush1.msra.mxu0 %v100
    %282 = vmatprep.subr.mxu0 0.0
    %283 = vmatpush1.msra.mxu0 %v101
    %284 = vmatprep.subr.mxu0 0.0
    %285 = vmatpush1.msra.mxu0 %v102
    %286 = vmatprep.subr.mxu0 0.0
    %287 = vmatpush1.msra.mxu0 %v103
    %288 = vmatprep.subr.mxu0 0.0
    %289 = vmatpush1.msra.mxu0 %v104
    %290 = vmatprep.subr.mxu0 0.0
    %291 = vmatpush1.msra.mxu0 %v105
    %292 = vmatprep.subr.mxu0 0.0
    %293 = vmatpush1.msra.mxu0 %v106
    %294 = vmatprep.subr.mxu0 0.0
    %295 = vmatpush1.msra.mxu0 %v107
    %296 = vmatprep.subr.mxu0 0.0
    %297 = vmatpush1.msra.mxu0 %v108
    %298 = vmatprep.subr.mxu0 0.0
    %299 = vmatpush1.msra.mxu0 %v109
    %300 = vmatprep.subr.mxu0 0.0
    %301 = vmatpush1.msra.mxu0 %v110
    %302 = vmatprep.subr.mxu0 0.0
    %303 = vmatpush1.msra.mxu0 %v111
    %304 = vmatprep.subr.mxu0 0.0
    %305 = vmatpush1.msra.mxu0 %v112
    %306 = vmatprep.subr.mxu0 0.0
    %307 = vmatpush1.msra.mxu0 %v113
    %308 = vmatprep.subr.mxu0 0.0
    %309 = vmatpush1.msra.mxu0 %v114
    %310 = vmatprep.subr.mxu0 0.0
    %311 = vmatpush1.msra.mxu0 %v115
    %312 = vmatprep.subr.mxu0 0.0
    %313 = vmatpush1.msra.mxu0 %v116
    %314 = vmatprep.subr.mxu0 0.0
    %315 = vmatpush1.msra.mxu0 %v117
    %316 = vmatprep.subr.mxu0 0.0
    %317 = vmatpush1.msra.mxu0 %v118
    %318 = vmatprep.subr.mxu0 0.0
    %319 = vmatpush1.msra.mxu0 %v119
    %320 = vmatprep.subr.mxu0 0.0
    %321 = vmatpush1.msra.mxu0 %v120
    %322 = vmatprep.subr.mxu0 0.0
    %323 = vmatpush1.msra.mxu0 %v121
    %324 = vmatprep.subr.mxu0 0.0
    %325 = vmatpush1.msra.mxu0 %v122
    %326 = vmatprep.subr.mxu0 0.0
    %327 = vmatpush1.msra.mxu0 %v123
    %328 = vmatprep.subr.mxu0 0.0
    %329 = vmatpush1.msra.mxu0 %v124
    %330 = vmatprep.mubr.f32.mxu0 %v56
    %331 = vmatmul.mubr.f32.gmra.mrb[0].mxu0 %v55
    %v332 = vpop.f32.mrb[0].mxu0
    %v333 = vadd.f32 %v263, %v332
    %v334 = vpop.f32.mrb[0].mxu0
    %335 = vdwg.mxu0
    %336 = vmatprep.subr.mxu0 0.0
    %337 = vmatpush1.msra.mxu0 %v125
    %338 = vmatprep.subr.mxu0 0.0
    %339 = vmatpush1.msra.mxu0 %v126
    %340 = vmatprep.subr.mxu0 0.0
    %341 = vmatpush1.msra.mxu0 %v127
    %342 = vmatprep.subr.mxu0 0.0
    %343 = vmatpush1.msra.mxu0 %v128
    %344 = vmatprep.subr.mxu0 0.0
    %345 = vmatpush1.msra.mxu0 %v129
    %346 = vmatprep.subr.mxu0 0.0
    %347 = vmatpush1.msra.mxu0 %v130
    %348 = vmatprep.subr.mxu0 0.0
    %349 = vmatpush1.msra.mxu0 %v131
    %350 = vmatprep.subr.mxu0 0.0
    %351 = vmatpush1.msra.mxu0 %v132
    %352 = vmatprep.subr.mxu0 0.0
    %353 = vmatpush1.msra.mxu0 %v133
    %354 = vmatprep.subr.mxu0 0.0
    %355 = vmatpush1.msra.mxu0 %v134
    %356 = vmatprep.subr.mxu0 0.0
    %357 = vmatpush1.msra.mxu0 %v135
    %358 = vmatprep.subr.mxu0 0.0
    %359 = vmatpush1.msra.mxu0 %v136
    %360 = vmatprep.subr.mxu0 0.0
    %361 = vmatpush1.msra.mxu0 %v137
    %362 = vmatprep.subr.mxu0 0.0
    %363 = vmatpush1.msra.mxu0 %v138
    %364 = vmatprep.subr.mxu0 0.0
    %365 = vmatpush1.msra.mxu0 %v139
    %366 = vmatprep.subr.mxu0 0.0
    %367 = vmatpush1.msra.mxu0 %v140
    %368 = vmatprep.subr.mxu0 0.0
    %369 = vmatpush1.msra.mxu0 %v141
    %370 = vmatprep.subr.mxu0 0.0
    %371 = vmatpush1.msra.mxu0 %v142
    %372 = vmatprep.subr.mxu0 0.0
    %373 = vmatpush1.msra.mxu0 %v143
    %374 = vmatprep.subr.mxu0 0.0
    %375 = vmatpush1.msra.mxu0 %v144
    %376 = vmatprep.subr.mxu0 0.0
    %377 = vmatpush1.msra.mxu0 %v145
    %378 = vmatprep.subr.mxu0 0.0
    %379 = vmatpush1.msra.mxu0 %v146
    %380 = vmatprep.subr.mxu0 0.0
    %381 = vmatpush1.msra.mxu0 %v147
    %382 = vmatprep.subr.mxu0 0.0
    %383 = vmatpush1.msra.mxu0 %v148
    %384 = vmatprep.subr.mxu0 0.0
    %385 = vmatpush1.msra.mxu0 %v149
    %386 = vmatprep.subr.mxu0 0.0
    %387 = vmatpush1.msra.mxu0 %v150
    %388 = vmatprep.subr.mxu0 0.0
    %389 = vmatpush1.msra.mxu0 %v151
    %390 = vmatprep.subr.mxu0 0.0
    %391 = vmatpush1.msra.mxu0 %v152
    %392 = vmatprep.subr.mxu0 0.0
    %393 = vmatpush1.msra.mxu0 %v153
    %394 = vmatprep.subr.mxu0 0.0
    %395 = vmatpush1.msra.mxu0 %v154
    %396 = vmatprep.subr.mxu0 0.0
    %397 = vmatpush1.msra.mxu0 %v155
    %398 = vmatprep.subr.mxu0 0.0
    %399 = vmatpush1.msra.mxu0 %v156
    %400 = vmatprep.mubr.f32.mxu0 %v58
    %401 = vmatmul.mubr.f32.gmra.mrb[0].mxu0 %v57
    %v402 = vpop.f32.mrb[0].mxu0
    %v403 = vadd.f32 %v333, %v402
    %v404 = vpop.f32.mrb[0].mxu0
    %405 = vdwg.mxu0
    %406 = vmatprep.subr.mxu0 0.0
    %407 = vmatpush1.msra.mxu0 %v157
    %408 = vmatprep.subr.mxu0 0.0
    %409 = vmatpush1.msra.mxu0 %v158
    %410 = vmatprep.subr.mxu0 0.0
    %411 = vmatpush1.msra.mxu0 %v159
    %412 = vmatprep.subr.mxu0 0.0
    %413 = vmatpush1.msra.mxu0 %v160
    %414 = vmatprep.subr.mxu0 0.0
    %415 = vmatpush1.msra.mxu0 %v161
    %416 = vmatprep.subr.mxu0 0.0
    %417 = vmatpush1.msra.mxu0 %v162
    %418 = vmatprep.subr.mxu0 0.0
    %419 = vmatpush1.msra.mxu0 %v163
    %420 = vmatprep.subr.mxu0 0.0
    %421 = vmatpush1.msra.mxu0 %v164
    %422 = vmatprep.subr.mxu0 0.0
    %423 = vmatpush1.msra.mxu0 %v165
    %424 = vmatprep.subr.mxu0 0.0
    %425 = vmatpush1.msra.mxu0 %v166
    %426 = vmatprep.subr.mxu0 0.0
    %427 = vmatpush1.msra.mxu0 %v167
    %428 = vmatprep.subr.mxu0 0.0
    %429 = vmatpush1.msra.mxu0 %v168
    %430 = vmatprep.subr.mxu0 0.0
    %431 = vmatpush1.msra.mxu0 %v169
    %432 = vmatprep.subr.mxu0 0.0
    %433 = vmatpush1.msra.mxu0 %v170
    %434 = vmatprep.subr.mxu0 0.0
    %435 = vmatpush1.msra.mxu0 %v171
    %436 = vmatprep.subr.mxu0 0.0
    %437 = vmatpush1.msra.mxu0 %v172
    %438 = vmatprep.subr.mxu0 0.0
    %439 = vmatpush1.msra.mxu0 %v173
    %440 = vmatprep.subr.mxu0 0.0
    %441 = vmatpush1.msra.mxu0 %v174
    %442 = vmatprep.subr.mxu0 0.0
    %443 = vmatpush1.msra.mxu0 %v175
    %444 = vmatprep.subr.mxu0 0.0
    %445 = vmatpush1.msra.mxu0 %v176
    %446 = vmatprep.subr.mxu0 0.0
    %447 = vmatpush1.msra.mxu0 %v177
    %448 = vmatprep.subr.mxu0 0.0
    %449 = vmatpush1.msra.mxu0 %v178
    %450 = vmatprep.subr.mxu0 0.0
    %451 = vmatpush1.msra.mxu0 %v179
    %452 = vmatprep.subr.mxu0 0.0
    %453 = vmatpush1.msra.mxu0 %v180
    %454 = vmatprep.subr.mxu0 0.0
    %455 = vmatpush1.msra.mxu0 %v181
    %456 = vmatprep.subr.mxu0 0.0
    %457 = vmatpush1.msra.mxu0 %v182
    %458 = vmatprep.subr.mxu0 0.0
    %459 = vmatpush1.msra.mxu0 %v183
    %460 = vmatprep.subr.mxu0 0.0
    %461 = vmatpush1.msra.mxu0 %v184
    %462 = vmatprep.subr.mxu0 0.0
    %463 = vmatpush1.msra.mxu0 %v185
    %464 = vmatprep.subr.mxu0 0.0
    %465 = vmatpush1.msra.mxu0 %v186
    %466 = vmatprep.subr.mxu0 0.0
    %467 = vmatpush1.msra.mxu0 %v187
    %468 = vmatprep.subr.mxu0 0.0
    %469 = vmatpush1.msra.mxu0 %v188
    %470 = vmatprep.mubr.f32.mxu0 %v60
    %471 = vmatmul.mubr.f32.gmra.mrb[0].mxu0 %v59
    %v472 = vpop.f32.mrb[0].mxu0
    %v473 = vadd.f32 %v403, %v472
    %v474 = vpop.f32.mrb[0].mxu0
    %475 = vdwg.mxu0
    %v476 = vxor.u32 %v473, 2147483648
    %v477 = vmul.f32 %v476, 1.442695
    %v478 = vpow.pop %v477
    %v479 = vadd.f32 %v478, 1.0
    %v480 = vrcp.pop %v479
    %v481 = vmul.f32 1.0, %v480
    %v482 = vld [vmem:[%s3] sm:$0xff]
    %v483 = vld [vmem:[%s3 + $0x8] sm:$0xff]
    %v484 = vld [vmem:[%s3 + $0x10] sm:$0xff]
    %v485 = vld [vmem:[%s3 + $0x18] sm:$0xff]
    %v486 = vld [vmem:[%s3 + $0x20] sm:$0xff]
    %v487 = vld [vmem:[%s3 + $0x28] sm:$0xff]
    %v488 = vld [vmem:[%s3 + $0x30] sm:$0xff]
    %v489 = vld [vmem:[%s3 + $0x38] sm:$0xff]
    %v490 = vld [vmem:[%s3 + $0x40] sm:$0xff]
    %v491 = vld [vmem:[%s3 + $0x48] sm:$0xff]
    %v492 = vld [vmem:[%s3 + $0x50] sm:$0xff]
    %v493 = vld [vmem:[%s3 + $0x58] sm:$0xff]
    %v494 = vld [vmem:[%s3 + $0x60] sm:$0xff]
    %v495 = vld [vmem:[%s3 + $0x68] sm:$0xff]
    %v496 = vld [vmem:[%s3 + $0x70] sm:$0xff]
    %v497 = vld [vmem:[%s3 + $0x78] sm:$0xff]
    %v498 = vld [vmem:[%s4] sm:$0x1]
    %v500 = vlaneseq
    %v501 = vshrl.u32 %v500, 7
    %v502 = vsub.s32 0, %v501
    %v503 = vrot.slane %v498, %v502
    %505 = vmatprep.subr.mxu0 0.0
    %506 = vmatpush1.msra.mxu0 %v482
    %507 = vmatprep.subr.mxu0 0.0
    %508 = vmatpush1.msra.mxu0 %v483
    %509 = vmatprep.subr.mxu0 0.0
    %510 = vmatpush1.msra.mxu0 %v484
    %511 = vmatprep.subr.mxu0 0.0
    %512 = vmatpush1.msra.mxu0 %v485
    %513 = vmatprep.subr.mxu0 0.0
    %514 = vmatpush1.msra.mxu0 %v486
    %515 = vmatprep.subr.mxu0 0.0
    %516 = vmatpush1.msra.mxu0 %v487
    %517 = vmatprep.subr.mxu0 0.0
    %518 = vmatpush1.msra.mxu0 %v488
    %519 = vmatprep.subr.mxu0 0.0
    %520 = vmatpush1.msra.mxu0 %v489
    %521 = vmatprep.subr.mxu0 0.0
    %522 = vmatpush1.msra.mxu0 %v490
    %523 = vmatprep.subr.mxu0 0.0
    %524 = vmatpush1.msra.mxu0 %v491
    %525 = vmatprep.subr.mxu0 0.0
    %526 = vmatpush1.msra.mxu0 %v492
    %527 = vmatprep.subr.mxu0 0.0
    %528 = vmatpush1.msra.mxu0 %v493
    %529 = vmatprep.subr.mxu0 0.0
    %530 = vmatpush1.msra.mxu0 %v494
    %531 = vmatprep.subr.mxu0 0.0
    %532 = vmatpush1.msra.mxu0 %v495
    %533 = vmatprep.subr.mxu0 0.0
    %534 = vmatpush1.msra.mxu0 %v496
    %535 = vmatprep.subr.mxu0 0.0
    %536 = vmatpush1.msra.mxu0 %v497
    %537 = vmatprep.subr.mxu0 0.0
    %538 = vmatpush1.msra.mxu0 0.0
    %539 = vmatprep.subr.mxu0 0.0
    %540 = vmatpush1.msra.mxu0 0.0
    %541 = vmatprep.subr.mxu0 0.0
    %542 = vmatpush1.msra.mxu0 0.0
    %543 = vmatprep.subr.mxu0 0.0
    %544 = vmatpush1.msra.mxu0 0.0
    %545 = vmatprep.subr.mxu0 0.0
    %546 = vmatpush1.msra.mxu0 0.0
    %547 = vmatprep.subr.mxu0 0.0
    %548 = vmatpush1.msra.mxu0 0.0
    %549 = vmatprep.subr.mxu0 0.0
    %550 = vmatpush1.msra.mxu0 0.0
    %551 = vmatprep.subr.mxu0 0.0
    %552 = vmatpush1.msra.mxu0 0.0
    %553 = vmatprep.subr.mxu0 0.0
    %554 = vmatpush1.msra.mxu0 0.0
    %555 = vmatprep.subr.mxu0 0.0
    %556 = vmatpush1.msra.mxu0 0.0
    %557 = vmatprep.subr.mxu0 0.0
    %558 = vmatpush1.msra.mxu0 0.0
    %559 = vmatprep.subr.mxu0 0.0
    %560 = vmatpush1.msra.mxu0 0.0
    %561 = vmatprep.subr.mxu0 0.0
    %562 = vmatpush1.msra.mxu0 0.0
    %563 = vmatprep.subr.mxu0 0.0
    %564 = vmatpush1.msra.mxu0 0.0
    %565 = vmatprep.subr.mxu0 0.0
    %566 = vmatpush1.msra.mxu0 0.0
    %567 = vmatprep.subr.mxu0 0.0
    %568 = vmatpush1.msra.mxu0 0.0
    %569 = vmatprep.mubr.f32.mxu0 0.0
    %570 = vmatmul.mubr.f32.gmra.mrb[0].mxu0 %v481
    %v571 = vpop.f32.mrb[0].mxu0
    %v572 = vadd.f32 %v503, %v571
    %v573 = vpop.f32.mrb[0].mxu0
    %574 = vdwg.mxu0
    %v575 = vxor.u32 %v572, 2147483648
    %v576 = vmul.f32 %v575, 1.442695
    %v577 = vpow.pop %v576
    %v578 = vadd.f32 %v577, 1.0
    %v579 = vrcp.pop %v578
    %v580 = vmul.f32 1.0, %v579
    %v581 = vld [vmem:[%s5] sm:$0xff]
    %v582 = vld [vmem:[%s5 + $0x8] sm:$0xff]
    %v583 = vld [vmem:[%s5 + $0x10] sm:$0xff]
    %v584 = vld [vmem:[%s5 + $0x18] sm:$0xff]
    %v585 = vld [vmem:[%s5 + $0x20] sm:$0xff]
    %v586 = vld [vmem:[%s5 + $0x28] sm:$0xff]
    %v587 = vld [vmem:[%s5 + $0x30] sm:$0xff]
    %v588 = vld [vmem:[%s5 + $0x38] sm:$0xff]
    %v589 = vld [vmem:[%s5 + $0x40] sm:$0xff]
    %v590 = vld [vmem:[%s5 + $0x48] sm:$0xff]
    %v591 = vld [vmem:[%s5 + $0x50] sm:$0xff]
    %v592 = vld [vmem:[%s5 + $0x58] sm:$0xff]
    %v593 = vld [vmem:[%s5 + $0x60] sm:$0xff]
    %v594 = vld [vmem:[%s5 + $0x68] sm:$0xff]
    %v595 = vld [vmem:[%s5 + $0x70] sm:$0xff]
    %v596 = vld [vmem:[%s5 + $0x78] sm:$0xff]
    %v597 = vld [vmem:[%s6] sm:$0x1]
    %v599 = vlaneseq
    %v600 = vshrl.u32 %v599, 7
    %v601 = vsub.s32 0, %v600
    %v602 = vrot.slane %v597, %v601
    %604 = vmatprep.subr.mxu0 0.0
    %605 = vmatpush1.msra.mxu0 %v581
    %606 = vmatprep.subr.mxu0 0.0
    %607 = vmatpush1.msra.mxu0 %v582
    %608 = vmatprep.subr.mxu0 0.0
    %609 = vmatpush1.msra.mxu0 %v583
    %610 = vmatprep.subr.mxu0 0.0
    %611 = vmatpush1.msra.mxu0 %v584
    %612 = vmatprep.subr.mxu0 0.0
    %613 = vmatpush1.msra.mxu0 %v585
    %614 = vmatprep.subr.mxu0 0.0
    %615 = vmatpush1.msra.mxu0 %v586
    %616 = vmatprep.subr.mxu0 0.0
    %617 = vmatpush1.msra.mxu0 %v587
    %618 = vmatprep.subr.mxu0 0.0
    %619 = vmatpush1.msra.mxu0 %v588
    %620 = vmatprep.subr.mxu0 0.0
    %621 = vmatpush1.msra.mxu0 %v589
    %622 = vmatprep.subr.mxu0 0.0
    %623 = vmatpush1.msra.mxu0 %v590
    %624 = vmatprep.subr.mxu0 0.0
    %625 = vmatpush1.msra.mxu0 %v591
    %626 = vmatprep.subr.mxu0 0.0
    %627 = vmatpush1.msra.mxu0 %v592
    %628 = vmatprep.subr.mxu0 0.0
    %629 = vmatpush1.msra.mxu0 %v593
    %630 = vmatprep.subr.mxu0 0.0
    %631 = vmatpush1.msra.mxu0 %v594
    %632 = vmatprep.subr.mxu0 0.0
    %633 = vmatpush1.msra.mxu0 %v595
    %634 = vmatprep.subr.mxu0 0.0
    %635 = vmatpush1.msra.mxu0 %v596
    %636 = vmatprep.subr.mxu0 0.0
    %637 = vmatpush1.msra.mxu0 0.0
    %638 = vmatprep.subr.mxu0 0.0
    %639 = vmatpush1.msra.mxu0 0.0
    %640 = vmatprep.subr.mxu0 0.0
    %641 = vmatpush1.msra.mxu0 0.0
    %642 = vmatprep.subr.mxu0 0.0
    %643 = vmatpush1.msra.mxu0 0.0
    %644 = vmatprep.subr.mxu0 0.0
    %645 = vmatpush1.msra.mxu0 0.0
    %646 = vmatprep.subr.mxu0 0.0
    %647 = vmatpush1.msra.mxu0 0.0
    %648 = vmatprep.subr.mxu0 0.0
    %649 = vmatpush1.msra.mxu0 0.0
    %650 = vmatprep.subr.mxu0 0.0
    %651 = vmatpush1.msra.mxu0 0.0
    %652 = vmatprep.subr.mxu0 0.0
    %653 = vmatpush1.msra.mxu0 0.0
    %654 = vmatprep.subr.mxu0 0.0
    %655 = vmatpush1.msra.mxu0 0.0
    %656 = vmatprep.subr.mxu0 0.0
    %657 = vmatpush1.msra.mxu0 0.0
    %658 = vmatprep.subr.mxu0 0.0
    %659 = vmatpush1.msra.mxu0 0.0
    %660 = vmatprep.subr.mxu0 0.0
    %661 = vmatpush1.msra.mxu0 0.0
    %662 = vmatprep.subr.mxu0 0.0
    %663 = vmatpush1.msra.mxu0 0.0
    %664 = vmatprep.subr.mxu0 0.0
    %665 = vmatpush1.msra.mxu0 0.0
    %666 = vmatprep.subr.mxu0 0.0
    %667 = vmatpush1.msra.mxu0 0.0
    %668 = vmatprep.mubr.f32.mxu0 0.0
    %669 = vmatmul.mubr.f32.gmra.mrb[0].mxu0 %v580
    %v670 = vpop.f32.mrb[0].mxu0
    %v671 = vadd.f32 %v602, %v670
    %v672 = vpop.f32.mrb[0].mxu0
    %673 = vdwg.mxu0
    %vm674 = vcmask 80896
    %675 = vst.msk [vmem:[#allocation7] sm:$0xff] %vm674, %v671
    // Predicated region
    $region38: #{tpu_custom_call.1} parent=1 // pred_check
      _
    $region39: #{tpu_custom_call.1} parent=1 // pred_check_branch
      %677 = sbr.rel (0) target = $region41
    $region40: #{tpu_custom_call.1} parent=1 // pred_region
      %s679 = ssub.s32 128, 128
      %680 = vsyncadd [#allocation4], %s679
      %s682 = sshll.u32 [#allocation7], 4
      %s683 = int_to_ptr.vmem [resolvable:$true] %s682
      %685 = dma.vmem_to_hbm [thread:$0]  %s683, 128, %s7, [#allocation4]
    $region41: #{tpu_custom_call.1} parent=1 // pred_fallthru
      _
    // Predicated region
    $region42: #{tpu_custom_call.1} parent=1 // pred_check
      _
    $region43: #{tpu_custom_call.1} parent=1 // pred_check_branch
      %687 = sbr.rel (0) target = $region45
    $region44: #{tpu_custom_call.1} parent=1 // pred_region
      %688 = dma.done [#allocation4], 128
    $region45: #{tpu_custom_call.1} parent=1 // pred_fallthru
      _
    %689 = vsyncpa [#allocation3], 1
    %690 = vsyncpa [#allocation6], 1
    %691 = vsyncpa [#allocation4], 1

</llo_original>
